<compile_context>
chip_gen: v6e
topology: v6e:2x2x1
jax: 0.10.0
libtpu: 0.0.40
codegen_flags: <defaults>
</compile_context>

<pallas_src>
import functools

import jax
import jax.numpy as jnp
from jax import lax
from jax.experimental import pallas as pl
from jax.experimental.pallas import tpu as pltpu


def _round_up(v, m):
    return -(-v // m) * m


# ---------------------------------------------------------------------------
# Shared per-tap MXU accumulation (no im2col copy: operands read directly from
# the VMEM-resident window, weight tap slabs are leading-dim indexed).
# ---------------------------------------------------------------------------
def _tap_accumulate(read_window, w_ref, *, kernel_size, stride, cin_p, lt):
    acc = None
    for k in range(kernel_size):
        p = k % stride          # phase plane (row offset p*cin_p)
        q = k // stride         # lane shift inside the phase plane
        rhs = read_window(p * cin_p, q)                       # (cin_p, lt)
        d = jnp.dot(w_ref[k], rhs, preferred_element_type=jnp.float32)
        acc = d if acc is None else acc + d
    return acc


# ---------------------------------------------------------------------------
# Fully fused kernel (single time tile): conv + GroupNorm + ReLU, no HBM
# intermediate.  Grid = (batch, cout_block).
# ---------------------------------------------------------------------------
def _make_fused_kernel(*, kernel_size, stride, cin_p, lt, l_out, group_size,
                       eps):
    def kernel(x_ref, w_ref, b_ref, g_ref, be_ref, gmat_ref, o_ref):
        def read_window(row0, q):
            return x_ref[0, row0:row0 + cin_p, q:q + lt]

        acc = _tap_accumulate(read_window, w_ref, kernel_size=kernel_size,
                              stride=stride, cin_p=cin_p, lt=lt)
        acc = acc + b_ref[...]                                # (co_blk, lt) f32

        if lt > l_out:                                        # mask padded tail
            col = lax.broadcasted_iota(jnp.int32, (1, lt), 1)
            stat = jnp.where(col < l_out, acc, 0.0)
        else:
            stat = acc
        psum = jnp.sum(stat, axis=1, keepdims=True)           # (co_blk, 1)
        psq = jnp.sum(stat * stat, axis=1, keepdims=True)

        inv_n = 1.0 / float(group_size * l_out)
        gsum = jnp.dot(gmat_ref[...], psum, preferred_element_type=jnp.float32)
        gsq = jnp.dot(gmat_ref[...], psq, preferred_element_type=jnp.float32)
        mean = gsum * inv_n
        var = jnp.maximum(gsq * inv_n - mean * mean, 0.0)     # f32, clamped
        rstd = lax.rsqrt(var + eps)
        scl = g_ref[...] * rstd
        shf = be_ref[...] - mean * scl
        o_ref[0] = jnp.maximum(acc * scl + shf, 0.0).astype(o_ref.dtype)

    return kernel


# ---------------------------------------------------------------------------
# Multi-tile pass 1: conv + running GroupNorm stats; scale/shift on last tile.
# Grid = (batch, cout_block, time_tile), time axis "arbitrary" (sequential).
# ---------------------------------------------------------------------------
def _make_stats_kernel(*, kernel_size, stride, cin_p, lt, l_out, group_size,
                       eps, need_halo):
    def kernel(*refs):
        if need_halo:
            (xm_ref, xh_ref, w_ref, b_ref, g_ref, be_ref, gmat_ref,
             y_ref, scale_ref, shift_ref, xb, sum_sc, sq_sc) = refs
        else:
            (xm_ref, w_ref, b_ref, g_ref, be_ref, gmat_ref,
             y_ref, scale_ref, shift_ref, sum_sc, sq_sc) = refs

        ti = pl.program_id(2)

        if need_halo:
            # Window assembled with two lane-dense, 128-aligned stores:
            # main tile + a 128-lane halo block from the next tile.
            xb[:, :lt] = xm_ref[0]
            xb[:, lt:] = xh_ref[0]

            def read_window(row0, q):
                return xb[row0:row0 + cin_p, q:q + lt]
        else:
            def read_window(row0, q):
                return xm_ref[0, row0:row0 + cin_p, q:q + lt]

        acc = _tap_accumulate(read_window, w_ref, kernel_size=kernel_size,
                              stride=stride, cin_p=cin_p, lt=lt)
        acc = acc + b_ref[...]
        y_ref[0] = acc.astype(y_ref.dtype)       # bf16 intermediate, lane-dense

        @pl.when(ti == 0)
        def _():
            sum_sc[...] = jnp.zeros_like(sum_sc)
            sq_sc[...] = jnp.zeros_like(sq_sc)

        last = pl.num_programs(2) - 1

        @pl.when(ti != last)                      # hot path: unmasked reduce
        def _():
            sum_sc[...] += jnp.sum(acc, axis=1, keepdims=True)
            sq_sc[...] += jnp.sum(acc * acc, axis=1, keepdims=True)

        @pl.when(ti == last)                      # masked tail + finalize
        def _():
            col = ti * lt + lax.broadcasted_iota(jnp.int32, (1, lt), 1)
            stat = jnp.where(col < l_out, acc, 0.0)
            s1 = sum_sc[...] + jnp.sum(stat, axis=1, keepdims=True)
            s2 = sq_sc[...] + jnp.sum(stat * stat, axis=1, keepdims=True)
            inv_n = 1.0 / float(group_size * l_out)
            gsum = jnp.dot(gmat_ref[...], s1, preferred_element_type=jnp.float32)
            gsq = jnp.dot(gmat_ref[...], s2, preferred_element_type=jnp.float32)
            mean = gsum * inv_n
            var = jnp.maximum(gsq * inv_n - mean * mean, 0.0)
            rstd = lax.rsqrt(var + eps)
            scl = g_ref[...] * rstd
            scale_ref[0] = scl
            shift_ref[0] = be_ref[...] - mean * scl

    return kernel


# ---------------------------------------------------------------------------
# Multi-tile pass 2: y * scale + shift, ReLU (fully parallel, lane-dense).
# ---------------------------------------------------------------------------
def _norm_relu_kernel(y_ref, scale_ref, shift_ref, o_ref):
    y = y_ref[0].astype(jnp.float32)
    o_ref[0] = jnp.maximum(y * scale_ref[0] + shift_ref[0],
                           0.0).astype(o_ref.dtype)


# ---------------------------------------------------------------------------
# Wrapper
# ---------------------------------------------------------------------------
def conv_layer_forward(x, w, b, gamma, beta, *, stride, norm_channels=8,
                       eps=1e-5, compute_dtype=jnp.bfloat16,
                       intermediate_dtype=jnp.bfloat16, out_dtype=jnp.float32,
                       time_tile=1024, cout_block=None,
                       vmem_cap_bytes=48 * 1024 * 1024):
    """Pallas implementation of ConvLayer.forward (transpose=False)."""
    # TODO(synk): ConvLayer(transpose=True) (ConvTranspose1d upsampling) and the
    # full Waveunet block composition are not implemented as Pallas kernels.
    B, cin, L = x.shape
    cout, cin_w, K = w.shape
    assert cin == cin_w
    assert cout % norm_channels == 0
    s = int(stride)
    assert (L - K) % s == 0                      # mirrors ConvLayer.get_output_size
    l_out = (L - K) // s + 1
    assert l_out > 0

    hs = (K - 1) // s                            # halo columns in phase space
    assert hs <= 128, "kernel_size too large for the fixed 128-lane halo block"

    cbytes = jnp.dtype(compute_dtype).itemsize
    ibytes = jnp.dtype(intermediate_dtype).itemsize
    obytes = jnp.dtype(out_dtype).itemsize

    # Channel padding to a sublane multiple (16 for packed bf16, 8 for f32).
    sub = 16 if cbytes < 4 else 8
    cin_p = _round_up(cin, sub)
    cin_ph = s * cin_p                           # rows of phase-deinterleaved input

    # Cout blocking (aligned to GroupNorm groups).  cout_block < cout adds a
    # second parallel grid axis -> feeds v7x's second TensorCore when B == 1.
    co_blk = cout if cout_block is None else int(cout_block)
    assert cout % co_blk == 0 and co_blk % norm_channels == 0
    if cbytes < 4 and co_blk != cout:
        assert co_blk % 16 == 0, "bf16 cout blocks must be multiples of 16"
    n_co = cout // co_blk

    # ---- time tiling: biggest lane-dense tile that fits the VMEM budget ----
    def vmem_estimate(lt_, fused_, halo_):
        est = K * co_blk * cin_p * cbytes * 2          # weight (double buffered)
        est += co_blk * co_blk * 4 * 2                 # gmat
        est += 10 * co_blk * 4                         # bias/gamma/beta/scale/shift
        est += co_blk * lt_ * 4                        # f32 acc temp
        est += 2 * cin_p * lt_ * cbytes                # per-tap rhs temps
        if fused_:
            est += cin_ph * (lt_ + 128) * cbytes * 2   # full-window input
            est += co_blk * lt_ * obytes * 2           # output
        else:
            est += cin_ph * lt_ * cbytes * 2           # main input tile
            est += co_blk * lt_ * ibytes * 2           # y intermediate
            if halo_:
                est += cin_ph * 128 * cbytes * 2       # halo input block
                est += cin_ph * (lt_ + 128) * cbytes   # window scratch
        return est

    lt = min(_round_up(max(int(time_tile), 128), 128), _round_up(l_out, 128))
    while True:
        T = -(-l_out // lt)
        fused = (T == 1)
        need_halo = (not fused) and hs > 0
        est = vmem_estimate(lt, fused, need_halo)
        if est <= int(0.85 * vmem_cap_bytes) or lt <= 128:
            break
        lt = max(128, (lt // 2) // 128 * 128)
    vmem_limit = int(min(vmem_cap_bytes, max(2 * est, 32 * 1024 * 1024)))

    lq = T * lt + 128                            # padded phase-space length

    # ---- channel-padded, cast, phase-deinterleaved input ----
    # stride == 1: pad + cast only (no transpose / tiling copy in HBM).
    x = x.astype(compute_dtype)
    if s == 1:
        assert lq >= L
        ph = jnp.pad(x, ((0, 0), (0, cin_p - cin), (0, lq - L)))
    else:
        pad_t = s * lq - L
        assert pad_t >= 0
        xp = jnp.pad(x, ((0, 0), (0, cin_p - cin), (0, pad_t)))
        ph = (xp.reshape(B, cin_p, lq, s).transpose(0, 3, 1, 2)
              .reshape(B, s * cin_p, lq))

    # Weight as (K, Cout, Cin_pad): tap slabs are leading-dim indexed (aligned).
    w3 = (jnp.pad(w, ((0, 0), (0, cin_p - cin), (0, 0)))
          .transpose(2, 0, 1).astype(compute_dtype))
    b2 = b.reshape(cout, 1).astype(jnp.float32)
    g2 = gamma.reshape(cout, 1).astype(jnp.float32)
    be2 = beta.reshape(cout, 1).astype(jnp.float32)
    chan = jnp.arange(co_blk)
    gmat = (chan[:, None] // norm_channels
            == chan[None, :] // norm_channels).astype(jnp.float32)

    cost = pl.CostEstimate(
        flops=int(2 * B * cout * K * cin_p * T * lt),
        transcendentals=int(B * cout),
        bytes_accessed=int(ph.size * cbytes + w3.size * cbytes
                           + B * cout * T * lt * (obytes if fused else ibytes)))

    # ---------------- single-tile fully fused path ----------------
    if fused:
        kernel = _make_fused_kernel(kernel_size=K, stride=s, cin_p=cin_p, lt=lt,
                                    l_out=l_out, group_size=norm_channels,
                                    eps=float(eps))
        out = pl.pallas_call(
            kernel,
            out_shape=jax.ShapeDtypeStruct((B, cout, lt), out_dtype),
            grid=(B, n_co),
            in_specs=[
                pl.BlockSpec((1, cin_ph, lq), lambda bi, ci: (bi, 0, 0)),
                pl.BlockSpec((K, co_blk, cin_p), lambda bi, ci: (0, ci, 0)),
                pl.BlockSpec((co_blk, 1), lambda bi, ci: (ci, 0)),
                pl.BlockSpec((co_blk, 1), lambda bi, ci: (ci, 0)),
                pl.BlockSpec((co_blk, 1), lambda bi, ci: (ci, 0)),
                pl.BlockSpec((co_blk, co_blk), lambda bi, ci: (0, 0)),
            ],
            out_specs=pl.BlockSpec((1, co_blk, lt), lambda bi, ci: (bi, ci, 0)),
            compiler_params=pltpu.CompilerParams(
                dimension_semantics=("parallel", "parallel"),
                vmem_limit_bytes=vmem_limit),
            cost_estimate=cost,
        )(ph, w3, b2, g2, be2, gmat)
        return out[..., :l_out]

    # ---------------- multi-tile two-pass path ----------------
    kernel = _make_stats_kernel(kernel_size=K, stride=s, cin_p=cin_p, lt=lt,
                                l_out=l_out, group_size=norm_channels,
                                eps=float(eps), need_halo=need_halo)
    lt_blocks = lt // 128

    in_specs = [pl.BlockSpec((1, cin_ph, lt), lambda bi, ci, ti: (bi, 0, ti))]
    operands = [ph]
    if need_halo:
        in_specs.append(pl.BlockSpec(
            (1, cin_ph, 128),
            lambda bi, ci, ti: (bi, 0, (ti + 1) * lt_blocks)))
        operands.append(ph)
    in_specs += [
        pl.BlockSpec((K, co_blk, cin_p), lambda bi, ci, ti: (0, ci, 0)),
        pl.BlockSpec((co_blk, 1), lambda bi, ci, ti: (ci, 0)),
        pl.BlockSpec((co_blk, 1), lambda bi, ci, ti: (ci, 0)),
        pl.BlockSpec((co_blk, 1), lambda bi, ci, ti: (ci, 0)),
        pl.BlockSpec((co_blk, co_blk), lambda bi, ci, ti: (0, 0)),
    ]
    operands += [w3, b2, g2, be2, gmat]

    scratch = []
    if need_halo:
        scratch.append(pltpu.VMEM((cin_ph, lt + 128), compute_dtype))
    scratch += [pltpu.VMEM((co_blk, 1), jnp.float32),
                pltpu.VMEM((co_blk, 1), jnp.float32)]

    y, scale, shift = pl.pallas_call(
        kernel,
        out_shape=(jax.ShapeDtypeStruct((B, cout, T * lt), intermediate_dtype),
                   jax.ShapeDtypeStruct((B, cout, 1), jnp.float32),
                   jax.ShapeDtypeStruct((B, cout, 1), jnp.float32)),
        grid=(B, n_co, T),
        in_specs=in_specs,
        out_specs=(
            pl.BlockSpec((1, co_blk, lt), lambda bi, ci, ti: (bi, ci, ti)),
            pl.BlockSpec((1, co_blk, 1), lambda bi, ci, ti: (bi, ci, 0)),
            pl.BlockSpec((1, co_blk, 1), lambda bi, ci, ti: (bi, ci, 0)),
        ),
        scratch_shapes=scratch,
        compiler_params=pltpu.CompilerParams(
            dimension_semantics=("parallel", "parallel", "arbitrary"),
            vmem_limit_bytes=vmem_limit),
        cost_estimate=cost,
    )(*operands)

    out = pl.pallas_call(
        _norm_relu_kernel,
        out_shape=jax.ShapeDtypeStruct((B, cout, T * lt), out_dtype),
        grid=(B, T),
        in_specs=[
            pl.BlockSpec((1, cout, lt), lambda bi, ti: (bi, 0, ti)),
            pl.BlockSpec((1, cout, 1), lambda bi, ti: (bi, 0, 0)),
            pl.BlockSpec((1, cout, 1), lambda bi, ti: (bi, 0, 0)),
        ],
        out_specs=pl.BlockSpec((1, cout, lt), lambda bi, ti: (bi, 0, ti)),
        compiler_params=pltpu.CompilerParams(
            dimension_semantics=("parallel", "parallel"),
            vmem_limit_bytes=vmem_limit),
    )(y, scale, shift)

    return out[..., :l_out]


# ---------------------------------------------------------------------------
# Pure-JAX reference mirroring the PyTorch module.
# ---------------------------------------------------------------------------
def conv_layer_reference(x, w, b, gamma, beta, *, stride, norm_channels=8,
                         eps=1e-5):
    cout = w.shape[0]
    num_groups = cout // norm_channels
    y = lax.conv_general_dilated(
        x, w, window_strides=(stride,), padding="VALID",
        dimension_numbers=("NCH", "OIH", "NCH"),
        precision=lax.Precision.HIGHEST)
    y = y + b[None, :, None]
    B, C, L = y.shape
    yg = y.reshape(B, num_groups, C // num_groups, L)
    mean = jnp.mean(yg, axis=(2, 3), keepdims=True)
    var = jnp.mean((yg - mean) ** 2, axis=(2, 3), keepdims=True)
    yn = ((yg - mean) / jnp.sqrt(var + eps)).reshape(B, C, L)
    return jnp.maximum(yn * gamma[None, :, None] + beta[None, :, None], 0.0)


if __name__ == "__main__":
    def run_case(name, B, CIN, COUT, K, STRIDE, L, *, time_tile=1024,
                 compute_dtype=jnp.float32, intermediate_dtype=jnp.float32,
                 cout_block=None, atol=2e-3):
        key = jax.random.PRNGKey(0)
        kx, kw, kb, kg, kbe = jax.random.split(key, 5)
        x = jax.random.normal(kx, (B, CIN, L), dtype=jnp.float32)
        w = jax.random.normal(kw, (COUT, CIN, K), dtype=jnp.float32) * 0.2
        b = jax.random.normal(kb, (COUT,), dtype=jnp.float32) * 0.1
        gamma = 1.0 + 0.1 * jax.random.normal(kg, (COUT,), dtype=jnp.float32)
        beta = 0.1 * jax.random.normal(kbe, (COUT,), dtype=jnp.float32)

        out = conv_layer_forward(x, w, b, gamma, beta, stride=STRIDE,
                                 time_tile=time_tile,
                                 compute_dtype=compute_dtype,
                                 intermediate_dtype=intermediate_dtype,
                                 cout_block=cout_block)
        out = jax.block_until_ready(out)
        ref = jax.block_until_ready(
            conv_layer_reference(x, w, b, gamma, beta, stride=STRIDE))
        assert out.shape == ref.shape, (name, out.shape, ref.shape)
        err = float(jnp.max(jnp.abs(out.astype(jnp.float32) - ref)))
        assert err < atol, (name, err)

    # 1) downconv-like layer (stride 2, kernel 5): fully fused single-tile path.
    run_case("stride2", B=2, CIN=4, COUT=16, K=5, STRIDE=2, L=21)
    # 2) shortcut conv (stride 1, kernel 5): fused path, pad+cast-only wrapper.
    run_case("stride1", B=2, CIN=4, COUT=16, K=5, STRIDE=1, L=16)
    # 3) bottleneck conv (kernel 1, stride 1): fused path.
    run_case("kernel1", B=2, CIN=8, COUT=16, K=1, STRIDE=1, L=12)
    # 4) multi-tile two-pass path (halo blocks, streamed stats), f32 intermediate.
    run_case("tiled_f32", B=2, CIN=4, COUT=16, K=5, STRIDE=1, L=204,
             time_tile=128)
    # 5) multi-tile two-pass with bf16 intermediate y (HBM-traffic saver).
    run_case("tiled_bf16", B=2, CIN=4, COUT=16, K=5, STRIDE=1, L=204,
             time_tile=128, intermediate_dtype=jnp.bfloat16, atol=0.08)
    # 6) multi-tile, kernel 1 (no-halo branch of the two-pass path).
    run_case("tiled_k1", B=2, CIN=4, COUT=16, K=1, STRIDE=1, L=200,
             time_tile=128)
    # 7) Cout split into group-aligned blocks (v7x second-TensorCore path), B=1.
    run_case("cosplit", B=1, CIN=4, COUT=16, K=5, STRIDE=2, L=21, cout_block=8)
    # 8) bf16 matmul operands (perf-default dtype) — loose tolerance.
    run_case("bf16", B=2, CIN=4, COUT=16, K=5, STRIDE=2, L=21,
             compute_dtype=jnp.bfloat16, intermediate_dtype=jnp.bfloat16,
             atol=0.25)

    print("KERNEL_OK")
</pallas_src>

<mosaic_0001>
module attributes {stable_mosaic.version = 11 : i64} {
  func.func @kernel(%arg0: i32, %arg1: i32, %arg2: memref<1x16x256xf32, #tpu.memory_space<vmem>>, %arg3: memref<5x16x8xf32, #tpu.memory_space<vmem>>, %arg4: memref<16x1xf32, #tpu.memory_space<vmem>>, %arg5: memref<16x1xf32, #tpu.memory_space<vmem>>, %arg6: memref<16x1xf32, #tpu.memory_space<vmem>>, %arg7: memref<16x16xf32, #tpu.memory_space<vmem>>, %arg8: memref<1x16x128xf32, #tpu.memory_space<vmem>>) attributes {dimension_semantics = [#tpu.dimension_semantics<parallel>, #tpu.dimension_semantics<parallel>], iteration_bounds = array<i64: 2, 1>, scalar_prefetch = 0 : i64, scratch_operands = 0 : i64, tpu.core_type = #tpu.core_type<tc>, window_params = [{transform_indices = @transform_0, window_bounds = array<i64: 1, 16, 256>}, {transform_indices = @transform_1, window_bounds = array<i64: 5, 16, 8>}, {transform_indices = @transform_2, window_bounds = array<i64: 16, 1>}, {transform_indices = @transform_3, window_bounds = array<i64: 16, 1>}, {transform_indices = @transform_4, window_bounds = array<i64: 16, 1>}, {pipeline_mode = #tpu.pipeline_mode<synchronous>, transform_indices = @transform_5, window_bounds = array<i64: 16, 16>}, {transform_indices = @transform_6, window_bounds = array<i64: 1, 16, 128>}]} {
    %c0 = arith.constant 0 : index
    %c0_0 = arith.constant 0 : index
    %c0_1 = arith.constant 0 : index
    %0 = vector.load %arg2[%c0, %c0_0, %c0_1] : memref<1x16x256xf32, #tpu.memory_space<vmem>>, vector<1x8x128xf32>
    %1 = vector.shape_cast %0 : vector<1x8x128xf32> to vector<8x128xf32>
    %c0_2 = arith.constant 0 : index
    %c0_3 = arith.constant 0 : index
    %c0_4 = arith.constant 0 : index
    %2 = vector.load %arg3[%c0_2, %c0_3, %c0_4] : memref<5x16x8xf32, #tpu.memory_space<vmem>>, vector<1x16x8xf32>
    %3 = vector.shape_cast %2 : vector<1x16x8xf32> to vector<16x8xf32>
    %cst = arith.constant dense<0.000000e+00> : vector<16x128xf32>
    %4 = tpu.matmul %3, %1, %cst {dimension_numbers = #tpu.dot_dimension_numbers<[1], [0], [0], [1], [0, 0, 1, 1], [], []>} : vector<16x8xf32>, vector<8x128xf32>, vector<16x128xf32> -> vector<16x128xf32>
    %c0_5 = arith.constant 0 : index
    %c8 = arith.constant 8 : index
    %c0_6 = arith.constant 0 : index
    %5 = vector.load %arg2[%c0_5, %c8, %c0_6] : memref<1x16x256xf32, #tpu.memory_space<vmem>>, vector<1x8x128xf32>
    %6 = vector.shape_cast %5 : vector<1x8x128xf32> to vector<8x128xf32>
    %c1 = arith.constant 1 : index
    %c0_7 = arith.constant 0 : index
    %c0_8 = arith.constant 0 : index
    %7 = vector.load %arg3[%c1, %c0_7, %c0_8] : memref<5x16x8xf32, #tpu.memory_space<vmem>>, vector<1x16x8xf32>
    %8 = vector.shape_cast %7 : vector<1x16x8xf32> to vector<16x8xf32>
    %cst_9 = arith.constant dense<0.000000e+00> : vector<16x128xf32>
    %9 = tpu.matmul %8, %6, %cst_9 {dimension_numbers = #tpu.dot_dimension_numbers<[1], [0], [0], [1], [0, 0, 1, 1], [], []>} : vector<16x8xf32>, vector<8x128xf32>, vector<16x128xf32> -> vector<16x128xf32>
    %10 = arith.addf %4, %9 : vector<16x128xf32>
    %c0_10 = arith.constant 0 : index
    %c0_11 = arith.constant 0 : index
    %c1_12 = arith.constant 1 : index
    %11 = vector.load %arg2[%c0_10, %c0_11, %c1_12] : memref<1x16x256xf32, #tpu.memory_space<vmem>>, vector<1x8x128xf32>
    %12 = vector.shape_cast %11 : vector<1x8x128xf32> to vector<8x128xf32>
    %c2 = arith.constant 2 : index
    %c0_13 = arith.constant 0 : index
    %c0_14 = arith.constant 0 : index
    %13 = vector.load %arg3[%c2, %c0_13, %c0_14] : memref<5x16x8xf32, #tpu.memory_space<vmem>>, vector<1x16x8xf32>
    %14 = vector.shape_cast %13 : vector<1x16x8xf32> to vector<16x8xf32>
    %cst_15 = arith.constant dense<0.000000e+00> : vector<16x128xf32>
    %15 = tpu.matmul %14, %12, %cst_15 {dimension_numbers = #tpu.dot_dimension_numbers<[1], [0], [0], [1], [0, 0, 1, 1], [], []>} : vector<16x8xf32>, vector<8x128xf32>, vector<16x128xf32> -> vector<16x128xf32>
    %16 = arith.addf %10, %15 : vector<16x128xf32>
    %c0_16 = arith.constant 0 : index
    %c8_17 = arith.constant 8 : index
    %c1_18 = arith.constant 1 : index
    %17 = vector.load %arg2[%c0_16, %c8_17, %c1_18] : memref<1x16x256xf32, #tpu.memory_space<vmem>>, vector<1x8x128xf32>
    %18 = vector.shape_cast %17 : vector<1x8x128xf32> to vector<8x128xf32>
    %c3 = arith.constant 3 : index
    %c0_19 = arith.constant 0 : index
    %c0_20 = arith.constant 0 : index
    %19 = vector.load %arg3[%c3, %c0_19, %c0_20] : memref<5x16x8xf32, #tpu.memory_space<vmem>>, vector<1x16x8xf32>
    %20 = vector.shape_cast %19 : vector<1x16x8xf32> to vector<16x8xf32>
    %cst_21 = arith.constant dense<0.000000e+00> : vector<16x128xf32>
    %21 = tpu.matmul %20, %18, %cst_21 {dimension_numbers = #tpu.dot_dimension_numbers<[1], [0], [0], [1], [0, 0, 1, 1], [], []>} : vector<16x8xf32>, vector<8x128xf32>, vector<16x128xf32> -> vector<16x128xf32>
    %22 = arith.addf %16, %21 : vector<16x128xf32>
    %c0_22 = arith.constant 0 : index
    %c0_23 = arith.constant 0 : index
    %c2_24 = arith.constant 2 : index
    %23 = vector.load %arg2[%c0_22, %c0_23, %c2_24] : memref<1x16x256xf32, #tpu.memory_space<vmem>>, vector<1x8x128xf32>
    %24 = vector.shape_cast %23 : vector<1x8x128xf32> to vector<8x128xf32>
    %c4 = arith.constant 4 : index
    %c0_25 = arith.constant 0 : index
    %c0_26 = arith.constant 0 : index
    %25 = vector.load %arg3[%c4, %c0_25, %c0_26] : memref<5x16x8xf32, #tpu.memory_space<vmem>>, vector<1x16x8xf32>
    %26 = vector.shape_cast %25 : vector<1x16x8xf32> to vector<16x8xf32>
    %cst_27 = arith.constant dense<0.000000e+00> : vector<16x128xf32>
    %27 = tpu.matmul %26, %24, %cst_27 {dimension_numbers = #tpu.dot_dimension_numbers<[1], [0], [0], [1], [0, 0, 1, 1], [], []>} : vector<16x8xf32>, vector<8x128xf32>, vector<16x128xf32> -> vector<16x128xf32>
    %28 = arith.addf %22, %27 : vector<16x128xf32>
    %c0_28 = arith.constant 0 : index
    %c0_29 = arith.constant 0 : index
    %29 = vector.load %arg4[%c0_28, %c0_29] : memref<16x1xf32, #tpu.memory_space<vmem>>, vector<16x1xf32>
    %30 = vector.broadcast %29 : vector<16x1xf32> to vector<16x128xf32>
    %31 = arith.addf %28, %30 : vector<16x128xf32>
    %32 = tpu.iota {dimensions = array<i32: 1>} : vector<1x128xi32>
    %c9_i32 = arith.constant 9 : i32
    %33 = vector.broadcast %c9_i32 : i32 to vector<1x128xi32>
    %34 = arith.cmpi slt, %32, %33 : vector<1x128xi32>
    %cst_30 = arith.constant 0.000000e+00 : f32
    %35 = vector.shape_cast %34 : vector<1x128xi1> to vector<1x128xi1>
    %36 = vector.broadcast %35 : vector<1x128xi1> to vector<16x128xi1>
    %37 = vector.broadcast %cst_30 : f32 to vector<16x128xf32>
    %38 = arith.select %36, %31, %37 : vector<16x128xi1>, vector<16x128xf32>
    %cst_31 = arith.constant dense<0.000000e+00> : vector<16xf32>
    %39 = vector.multi_reduction <add>, %38, %cst_31 [1] : vector<16x128xf32> to vector<16xf32>
    %40 = vector.shape_cast %39 : vector<16xf32> to vector<16x1xf32>
    %41 = arith.mulf %38, %38 : vector<16x128xf32>
    %cst_32 = arith.constant dense<0.000000e+00> : vector<16xf32>
    %42 = vector.multi_reduction <add>, %41, %cst_32 [1] : vector<16x128xf32> to vector<16xf32>
    %43 = vector.shape_cast %42 : vector<16xf32> to vector<16x1xf32>
    %c0_33 = arith.constant 0 : index
    %c0_34 = arith.constant 0 : index
    %44 = vector.load %arg7[%c0_33, %c0_34] : memref<16x16xf32, #tpu.memory_space<vmem>>, vector<16x16xf32>
    %cst_35 = arith.constant dense<0.000000e+00> : vector<16x1xf32>
    %45 = tpu.matmul %44, %40, %cst_35 {dimension_numbers = #tpu.dot_dimension_numbers<[1], [0], [0], [1], [0, 0, 1, 1], [], []>} : vector<16x16xf32>, vector<16x1xf32>, vector<16x1xf32> -> vector<16x1xf32>
    %c0_36 = arith.constant 0 : index
    %c0_37 = arith.constant 0 : index
    %46 = vector.load %arg7[%c0_36, %c0_37] : memref<16x16xf32, #tpu.memory_space<vmem>>, vector<16x16xf32>
    %cst_38 = arith.constant dense<0.000000e+00> : vector<16x1xf32>
    %47 = tpu.matmul %46, %43, %cst_38 {dimension_numbers = #tpu.dot_dimension_numbers<[1], [0], [0], [1], [0, 0, 1, 1], [], []>} : vector<16x16xf32>, vector<16x1xf32>, vector<16x1xf32> -> vector<16x1xf32>
    %cst_39 = arith.constant 0.013888889 : f32
    %48 = vector.broadcast %cst_39 : f32 to vector<16x1xf32>
    %49 = arith.mulf %45, %48 : vector<16x1xf32>
    %cst_40 = arith.constant 0.013888889 : f32
    %50 = vector.broadcast %cst_40 : f32 to vector<16x1xf32>
    %51 = arith.mulf %47, %50 : vector<16x1xf32>
    %52 = arith.mulf %49, %49 : vector<16x1xf32>
    %53 = arith.subf %51, %52 : vector<16x1xf32>
    %cst_41 = arith.constant 0.000000e+00 : f32
    %54 = vector.broadcast %cst_41 : f32 to vector<16x1xf32>
    %55 = arith.maximumf %53, %54 : vector<16x1xf32>
    %cst_42 = arith.constant 9.99999974E-6 : f32
    %56 = vector.broadcast %cst_42 : f32 to vector<16x1xf32>
    %57 = arith.addf %55, %56 : vector<16x1xf32>
    %58 = math.rsqrt %57 : vector<16x1xf32>
    %c0_43 = arith.constant 0 : index
    %c0_44 = arith.constant 0 : index
    %59 = vector.load %arg5[%c0_43, %c0_44] : memref<16x1xf32, #tpu.memory_space<vmem>>, vector<16x1xf32>
    %60 = arith.mulf %59, %58 : vector<16x1xf32>
    %c0_45 = arith.constant 0 : index
    %c0_46 = arith.constant 0 : index
    %61 = vector.load %arg6[%c0_45, %c0_46] : memref<16x1xf32, #tpu.memory_space<vmem>>, vector<16x1xf32>
    %62 = arith.mulf %49, %60 : vector<16x1xf32>
    %63 = arith.subf %61, %62 : vector<16x1xf32>
    %64 = vector.broadcast %60 : vector<16x1xf32> to vector<16x128xf32>
    %65 = arith.mulf %31, %64 : vector<16x128xf32>
    %66 = vector.broadcast %63 : vector<16x1xf32> to vector<16x128xf32>
    %67 = arith.addf %65, %66 : vector<16x128xf32>
    %cst_47 = arith.constant 0.000000e+00 : f32
    %68 = vector.broadcast %cst_47 : f32 to vector<16x128xf32>
    %69 = arith.maximumf %67, %68 : vector<16x128xf32>
    %c0_48 = arith.constant 0 : index
    %c0_49 = arith.constant 0 : index
    %c0_50 = arith.constant 0 : index
    %70 = vector.load %arg8[%c0_48, %c0_49, %c0_50] : memref<1x16x128xf32, #tpu.memory_space<vmem>>, vector<1x16x128xf32>
    %71 = vector.shape_cast %70 : vector<1x16x128xf32> to vector<16x128xf32>
    %72 = vector.shape_cast %69 : vector<16x128xf32> to vector<1x16x128xf32>
    tpu.vector_store %arg8[%c0_48, %c0_49, %c0_50], %72 {strides = array<i32>} : memref<1x16x128xf32, #tpu.memory_space<vmem>>, vector<1x16x128xf32>,
    return
  }
  func.func @transform_0(%arg0: i32, %arg1: i32) -> (i32, i32, i32) {
    %c0_i32 = arith.constant 0 : i32
    %c0_i32_0 = arith.constant 0 : i32
    %c0_i32_1 = arith.constant 0 : i32
    return %arg0, %c0_i32, %c0_i32_0 : i32, i32, i32
  }
  func.func @transform_1(%arg0: i32, %arg1: i32) -> (i32, i32, i32) {
    %c0_i32 = arith.constant 0 : i32
    %c0_i32_0 = arith.constant 0 : i32
    %c0_i32_1 = arith.constant 0 : i32
    return %c0_i32, %arg1, %c0_i32_0 : i32, i32, i32
  }
  func.func @transform_2(%arg0: i32, %arg1: i32) -> (i32, i32) {
    %c0_i32 = arith.constant 0 : i32
    %c0_i32_0 = arith.constant 0 : i32
    return %arg1, %c0_i32 : i32, i32
  }
  func.func @transform_3(%arg0: i32, %arg1: i32) -> (i32, i32) {
    %c0_i32 = arith.constant 0 : i32
    %c0_i32_0 = arith.constant 0 : i32
    return %arg1, %c0_i32 : i32, i32
  }
  func.func @transform_4(%arg0: i32, %arg1: i32) -> (i32, i32) {
    %c0_i32 = arith.constant 0 : i32
    %c0_i32_0 = arith.constant 0 : i32
    return %arg1, %c0_i32 : i32, i32
  }
  func.func @transform_5(%arg0: i32, %arg1: i32) -> (i32, i32) {
    %c0_i32 = arith.constant 0 : i32
    %c0_i32_0 = arith.constant 0 : i32
    %c0_i32_1 = arith.constant 0 : i32
    return %c0_i32, %c0_i32_0 : i32, i32
  }
  func.func @transform_6(%arg0: i32, %arg1: i32) -> (i32, i32, i32) {
    %c0_i32 = arith.constant 0 : i32
    %c0_i32_0 = arith.constant 0 : i32
    return %arg0, %arg1, %c0_i32 : i32, i32, i32
  }
}

</mosaic_0001>

<llo_original>
// kernel: tpu_custom_call.1
$region0: #{tpu_custom_call.1}
  #allocation0 [shape = 'u32[]', space=smem, size = 0x4, offset = 0x4, fixed_abs, tag = 'smem constant byte address 0x4 - core index']
  #allocation1 [shape = 'u32[144,128]{1,0:T(1,128)}', space=vmem, size = 0x12000, scoped, tag = 'internal scratch']
  %s0 = inlined_call_operand.vmem [shape: f32[2,16,256], index: 0, kind: input, shape index: {}]
  %s1 = inlined_call_operand.vmem [shape: f32[5,16,8], index: 1, kind: input, shape index: {}]
  %s2 = inlined_call_operand.vmem [shape: f32[16,1], index: 2, kind: input, shape index: {}]
  %s3 = inlined_call_operand.vmem [shape: f32[16,1], index: 3, kind: input, shape index: {}]
  %s4 = inlined_call_operand.vmem [shape: f32[16,1], index: 4, kind: input, shape index: {}]
  %s5 = inlined_call_operand.vmem [shape: f32[16,16], index: 5, kind: input, shape index: {}]
  %s6 = inlined_call_operand.hbm [shape: f32[2,16,128], index: 6, kind: output, shape index: {}]
  %s7 = sld [smem:[#allocation0]]
  $region57: #{tpu_custom_call.1} parent=0
    _
  %s9 = ssub.s32 1, %s7
  %s10 = scalar_select 0, %s9, %s7
  $region1: #{tpu_custom_call.1} parent=0
    #allocation2 [shape = 'u8[16384]{0}', space=vmem, size = 0x4000, scoped, tag = 'output window, operand 0']
    #allocation3 [shape = 's32[2]{0}', space=sflag, size = 0x8, scoped, tag = 'scoped memory for tpu_custom_call.1']
    %11 = vsyncpa [#allocation3], 0
    %s12 = scalar_lea.sflag [#allocation3], 1
    %13 = vsyncpa %s12, 0
    loop: start=0, step=1, limit=4
    $region2: #{tpu_custom_call.1} parent=1 // loop_pre_header
      _
    $region3: #{tpu_custom_call.1} parent=1 // loop_header
      %s15 = sphi 0, %s19
      %p16 = scmp.ge.s32.totalorder %s15, 4
      %s22 = sphi 0, %s34
      %s23 = sphi 0, %s30
      %s24 = sphi 0, %s22
      %s25 = sphi 0, %s23
      %s26 = sphi 0, %s24
      %s27 = sphi 0, %s25
      %s37 = sphi 0, %s39
      %s40 = sphi 0, %s37
      %s41 = sphi 0, %s40
      %s57 = sphi 0, %s41
      %s63 = sphi 0, %s65
      %s66 = sphi 0, %s63
      %s67 = sphi 0, %s66
      %s83 = sphi 0, %s67
      %s89 = sphi 0, %s91
      %s92 = sphi 0, %s89
      %s93 = sphi 0, %s92
      %s109 = sphi 0, %s93
      %s115 = sphi 0, %s117
      %s118 = sphi 0, %s115
      %s119 = sphi 0, %s118
      %s135 = sphi 0, %s119
      %s141 = sphi 0, %s143
      %s144 = sphi 0, %s141
      %s145 = sphi 0, %s144
      %s161 = sphi 0, %s145
      %s165 = sphi 0, %s165
      %s167 = sphi 0, %s165
      %s168 = sphi 0, %s167
      %s182 = sphi 0, %s168
      %s190 = sphi 0, %s192
      %s193 = sphi 0, %s190
      %s194 = sphi 0, %s193
      %s210 = sphi 0, %s194
    $region4: #{tpu_custom_call.1} parent=1 // loop_header_branch
      %18 = sbr.rel (%p16) target = $region8
    $region5: #{tpu_custom_call.1} parent=1 // loop_body
      %s20 = ssub.s32 %s15, 1
      %s21 = ssub.s32 %s15, 2
      %s28 = sadd.s32 1, %s23
      %p29 = scmp.ge.s32.totalorder %s28, 1
      %s30 = scalar_select %p29, 0, %s28
      %s31 = sadd.s32 1, %s22
      %s32 = scalar_select %p29, %s31, %s22
      %p33 = scmp.ge.s32.totalorder %s32, 2
      %s34 = scalar_select %p33, 0, %s32
      %s35 = ssub.s32 %s22, %s34
      %p36 = scmp.eq.s32.totalorder %s35, 0
      %s38 = sadd.s32 %s37, 1
      %s39 = scalar_select %p36, %s37, %s38
      %p42 = pneg %p36
      %p43 = scmp.eq.s32.totalorder %s15, 1
      %p44 = por %p42, %p43
      %p45 = scmp.ne.s32.totalorder %s37, %s40
      %p46 = scmp.eq.s32.totalorder %s15, 0
      %p47 = por %p45, %p46
      %p48 = scmp.ne.s32.totalorder %s37, %s40
      %p49 = scmp.eq.s32.totalorder %s20, 1
      %p50 = por %p48, %p49
      %p51 = scmp.ne.s32.totalorder %s40, %s41
      %p52 = scmp.eq.s32.totalorder %s20, 0
      %p53 = por %p51, %p52
      %p54 = scmp.ne.s32.totalorder %s40, %s41
      %p55 = scmp.eq.s32.totalorder %s21, 1
      %p56 = por %p54, %p55
      %p58 = scmp.ne.s32.totalorder %s41, %s57
      %p59 = scmp.eq.s32.totalorder %s21, 0
      %p60 = por %p58, %p59
      %s61 = ssub.s32 %s23, %s30
      %p62 = scmp.eq.s32.totalorder %s61, 0
      %s64 = sadd.s32 %s63, 1
      %s65 = scalar_select %p62, %s63, %s64
      %p68 = pneg %p62
      %p69 = scmp.eq.s32.totalorder %s15, 1
      %p70 = por %p68, %p69
      %p71 = scmp.ne.s32.totalorder %s63, %s66
      %p72 = scmp.eq.s32.totalorder %s15, 0
      %p73 = por %p71, %p72
      %p74 = scmp.ne.s32.totalorder %s63, %s66
      %p75 = scmp.eq.s32.totalorder %s20, 1
      %p76 = por %p74, %p75
      %p77 = scmp.ne.s32.totalorder %s66, %s67
      %p78 = scmp.eq.s32.totalorder %s20, 0
      %p79 = por %p77, %p78
      %p80 = scmp.ne.s32.totalorder %s66, %s67
      %p81 = scmp.eq.s32.totalorder %s21, 1
      %p82 = por %p80, %p81
      %p84 = scmp.ne.s32.totalorder %s67, %s83
      %p85 = scmp.eq.s32.totalorder %s21, 0
      %p86 = por %p84, %p85
      %s87 = ssub.s32 %s23, %s30
      %p88 = scmp.eq.s32.totalorder %s87, 0
      %s90 = sadd.s32 %s89, 1
      %s91 = scalar_select %p88, %s89, %s90
      %p94 = pneg %p88
      %p95 = scmp.eq.s32.totalorder %s15, 1
      %p96 = por %p94, %p95
      %p97 = scmp.ne.s32.totalorder %s89, %s92
      %p98 = scmp.eq.s32.totalorder %s15, 0
      %p99 = por %p97, %p98
      %p100 = scmp.ne.s32.totalorder %s89, %s92
      %p101 = scmp.eq.s32.totalorder %s20, 1
      %p102 = por %p100, %p101
      %p103 = scmp.ne.s32.totalorder %s92, %s93
      %p104 = scmp.eq.s32.totalorder %s20, 0
      %p105 = por %p103, %p104
      %p106 = scmp.ne.s32.totalorder %s92, %s93
      %p107 = scmp.eq.s32.totalorder %s21, 1
      %p108 = por %p106, %p107
      %p110 = scmp.ne.s32.totalorder %s93, %s109
      %p111 = scmp.eq.s32.totalorder %s21, 0
      %p112 = por %p110, %p111
      %s113 = ssub.s32 %s23, %s30
      %p114 = scmp.eq.s32.totalorder %s113, 0
      %s116 = sadd.s32 %s115, 1
      %s117 = scalar_select %p114, %s115, %s116
      %p120 = pneg %p114
      %p121 = scmp.eq.s32.totalorder %s15, 1
      %p122 = por %p120, %p121
      %p123 = scmp.ne.s32.totalorder %s115, %s118
      %p124 = scmp.eq.s32.totalorder %s15, 0
      %p125 = por %p123, %p124
      %p126 = scmp.ne.s32.totalorder %s115, %s118
      %p127 = scmp.eq.s32.totalorder %s20, 1
      %p128 = por %p126, %p127
      %p129 = scmp.ne.s32.totalorder %s118, %s119
      %p130 = scmp.eq.s32.totalorder %s20, 0
      %p131 = por %p129, %p130
      %p132 = scmp.ne.s32.totalorder %s118, %s119
      %p133 = scmp.eq.s32.totalorder %s21, 1
      %p134 = por %p132, %p133
      %p136 = scmp.ne.s32.totalorder %s119, %s135
      %p137 = scmp.eq.s32.totalorder %s21, 0
      %p138 = por %p136, %p137
      %s139 = ssub.s32 %s23, %s30
      %p140 = scmp.eq.s32.totalorder %s139, 0
      %s142 = sadd.s32 %s141, 1
      %s143 = scalar_select %p140, %s141, %s142
      %p146 = pneg %p140
      %p147 = scmp.eq.s32.totalorder %s15, 1
      %p148 = por %p146, %p147
      %p149 = scmp.ne.s32.totalorder %s141, %s144
      %p150 = scmp.eq.s32.totalorder %s15, 0
      %p151 = por %p149, %p150
      %p152 = scmp.ne.s32.totalorder %s141, %s144
      %p153 = scmp.eq.s32.totalorder %s20, 1
      %p154 = por %p152, %p153
      %p155 = scmp.ne.s32.totalorder %s144, %s145
      %p156 = scmp.eq.s32.totalorder %s20, 0
      %p157 = por %p155, %p156
      %p158 = scmp.ne.s32.totalorder %s144, %s145
      %p159 = scmp.eq.s32.totalorder %s21, 1
      %p160 = por %p158, %p159
      %p162 = scmp.ne.s32.totalorder %s145, %s161
      %p163 = scmp.eq.s32.totalorder %s21, 0
      %p164 = por %p162, %p163
      %s166 = sadd.s32 %s165, 1
      %p169 = scmp.eq.s32.totalorder %s15, 1
      %p170 = scmp.ne.s32.totalorder %s165, %s167
      %p171 = scmp.eq.s32.totalorder %s15, 0
      %p172 = por %p170, %p171
      %p173 = scmp.ne.s32.totalorder %s165, %s167
      %p174 = scmp.eq.s32.totalorder %s20, 1
      %p175 = por %p173, %p174
      %p176 = scmp.ne.s32.totalorder %s167, %s168
      %p177 = scmp.eq.s32.totalorder %s20, 0
      %p178 = por %p176, %p177
      %p179 = scmp.ne.s32.totalorder %s167, %s168
      %p180 = scmp.eq.s32.totalorder %s21, 1
      %p181 = por %p179, %p180
      %p183 = scmp.ne.s32.totalorder %s168, %s182
      %p184 = scmp.eq.s32.totalorder %s21, 0
      %p185 = por %p183, %p184
      %s186 = ssub.s32 %s22, %s34
      %s187 = ssub.s32 %s23, %s30
      %s188 = sor.u32 %s186, %s187
      %p189 = scmp.eq.s32.totalorder %s188, 0
      %s191 = sadd.s32 %s190, 1
      %s192 = scalar_select %p189, %s190, %s191
      %p195 = pneg %p189
      %p196 = scmp.eq.s32.totalorder %s15, 1
      %p197 = por %p195, %p196
      %p198 = scmp.ne.s32.totalorder %s190, %s193
      %p199 = scmp.eq.s32.totalorder %s15, 0
      %p200 = por %p198, %p199
      %p201 = scmp.ne.s32.totalorder %s190, %s193
      %p202 = scmp.eq.s32.totalorder %s20, 1
      %p203 = por %p201, %p202
      %p204 = scmp.ne.s32.totalorder %s193, %s194
      %p205 = scmp.eq.s32.totalorder %s20, 0
      %p206 = por %p204, %p205
      %p207 = scmp.ne.s32.totalorder %s193, %s194
      %p208 = scmp.eq.s32.totalorder %s21, 1
      %p209 = por %p207, %p208
      %p211 = scmp.ne.s32.totalorder %s194, %s210
      %p212 = scmp.eq.s32.totalorder %s21, 0
      %p213 = por %p211, %p212
      %p214 = scmp.le.s32.totalorder 1, %s15
      %p215 = scmp.lt.s32.totalorder %s15, 3
      %p216 = pnand %p214, %p215
      %p217 = pneg %p216
      // Predicated region
      $region9: #{tpu_custom_call.1} parent=5 // pred_check
        _
      $region10: #{tpu_custom_call.1} parent=5 // pred_check_branch
        %219 = sbr.rel (%p216) target = $region12
      $region11: #{tpu_custom_call.1} parent=5 // pred_region
        %s220 = ssub.s32 %s15, 1
        // Predicated region
        $region13: #{tpu_custom_call.1} parent=11 // pred_check
          %p221 = pneg %p79
        $region14: #{tpu_custom_call.1} parent=11 // pred_check_branch
          %223 = sbr.rel (%p221) target = $region16
        $region15: #{tpu_custom_call.1} parent=11 // pred_region
          %s224 = smul.u32 2, %s25
          %p225 = scmp.lt.s32.totalorder %s224, 1
          %s226 = scalar_select %p225, %s224, 1
          %s227 = smul.addr %s226, 8
          %s228 = scalar_lea.vmem %s1, %s227
          %s229 = smul.u32 2, %s25
        $region16: #{tpu_custom_call.1} parent=11 // pred_fallthru
          _
        // Predicated region
        $region17: #{tpu_custom_call.1} parent=11 // pred_check
          %p230 = pneg %p105
        $region18: #{tpu_custom_call.1} parent=11 // pred_check_branch
          %232 = sbr.rel (%p230) target = $region20
        $region19: #{tpu_custom_call.1} parent=11 // pred_region
          %s233 = smul.u32 2, %s25
          %p234 = scmp.lt.s32.totalorder %s233, 1
          %s235 = scalar_select %p234, %s233, 1
          %s236 = smul.addr %s235, 8
          %s237 = scalar_lea.vmem %s2, %s236
          %s238 = smul.u32 2, %s25
        $region20: #{tpu_custom_call.1} parent=11 // pred_fallthru
          _
        // Predicated region
        $region21: #{tpu_custom_call.1} parent=11 // pred_check
          %p239 = pneg %p131
        $region22: #{tpu_custom_call.1} parent=11 // pred_check_branch
          %241 = sbr.rel (%p239) target = $region24
        $region23: #{tpu_custom_call.1} parent=11 // pred_region
          %s242 = smul.u32 2, %s25
          %p243 = scmp.lt.s32.totalorder %s242, 1
          %s244 = scalar_select %p243, %s242, 1
          %s245 = smul.addr %s244, 8
          %s246 = scalar_lea.vmem %s3, %s245
          %s247 = smul.u32 2, %s25
        $region24: #{tpu_custom_call.1} parent=11 // pred_fallthru
          _
        // Predicated region
        $region25: #{tpu_custom_call.1} parent=11 // pred_check
          %p248 = pneg %p157
        $region26: #{tpu_custom_call.1} parent=11 // pred_check_branch
          %250 = sbr.rel (%p248) target = $region28
        $region27: #{tpu_custom_call.1} parent=11 // pred_region
          %s251 = smul.u32 2, %s25
          %p252 = scmp.lt.s32.totalorder %s251, 1
          %s253 = scalar_select %p252, %s251, 1
          %s254 = smul.addr %s253, 8
          %s255 = scalar_lea.vmem %s4, %s254
          %s256 = smul.u32 2, %s25
        $region28: #{tpu_custom_call.1} parent=11 // pred_fallthru
          _
        // Predicated region
        $region29: #{tpu_custom_call.1} parent=11 // pred_check
          %p257 = pneg %p178
        $region30: #{tpu_custom_call.1} parent=11 // pred_check_branch
          %259 = sbr.rel (%p257) target = $region32
        $region31: #{tpu_custom_call.1} parent=11 // pred_region
          _
        $region32: #{tpu_custom_call.1} parent=11 // pred_fallthru
          _
      $region12: #{tpu_custom_call.1} parent=5 // pred_fallthru
        _
      %p260 = scmp.lt.s32.totalorder %s15, 2
      // Predicated region
      $region33: #{tpu_custom_call.1} parent=5 // pred_check
        %p261 = pneg %p260
      $region34: #{tpu_custom_call.1} parent=5 // pred_check_branch
        %263 = sbr.rel (%p261) target = $region36
      $region35: #{tpu_custom_call.1} parent=5 // pred_region
        // Predicated region
        $region37: #{tpu_custom_call.1} parent=35 // pred_check
          %p264 = pneg %p47
        $region38: #{tpu_custom_call.1} parent=35 // pred_check_branch
          %266 = sbr.rel (%p264) target = $region40
        $region39: #{tpu_custom_call.1} parent=35 // pred_region
          %p267 = scmp.lt.s32.totalorder %s22, 1
          %s268 = scalar_select %p267, %s22, 1
          %s269 = smul.addr %s268, 4
          %s270 = smul.addr %s269, 8
          %s271 = scalar_lea.vmem %s0, %s270
        $region40: #{tpu_custom_call.1} parent=35 // pred_fallthru
          _
      $region36: #{tpu_custom_call.1} parent=5 // pred_fallthru
        _
      %p272 = scmp.le.s32.totalorder 1, %s15
      %p273 = scmp.lt.s32.totalorder %s15, 3
      %p274 = pnand %p272, %p273
      %p275 = pneg %p274
      // Predicated region
      $region41: #{tpu_custom_call.1} parent=5 // pred_check
        _
      $region42: #{tpu_custom_call.1} parent=5 // pred_check_branch
        %277 = sbr.rel (%p274) target = $region44
      $region43: #{tpu_custom_call.1} parent=5 // pred_region
        %s278 = ssub.s32 %s15, 1
        %p279 = scmp.lt.s32.totalorder %s24, 1
        %s280 = scalar_select %p279, %s24, 1
        %s281 = smul.addr %s280, 4
        %s282 = smul.addr %s281, 8
        %s283 = scalar_lea.vmem %s0, %s282
        %p284 = pneg %p53
        %p285 = pneg %p50
        %s286 = smul.u32 2, %s25
        %p287 = scmp.lt.s32.totalorder %s286, 1
        %s288 = scalar_select %p287, %s286, 1
        %s289 = smul.addr %s288, 8
        %s290 = scalar_lea.vmem %s1, %s289
        %p291 = pneg %p79
        %p292 = pneg %p76
        %s293 = smul.u32 2, %s25
        %p294 = scmp.lt.s32.totalorder %s293, 1
        %s295 = scalar_select %p294, %s293, 1
        %s296 = smul.addr %s295, 8
        %s297 = scalar_lea.vmem %s2, %s296
        %p298 = pneg %p105
        %p299 = pneg %p102
        %s300 = smul.u32 2, %s25
        %p301 = scmp.lt.s32.totalorder %s300, 1
        %s302 = scalar_select %p301, %s300, 1
        %s303 = smul.addr %s302, 8
        %s304 = scalar_lea.vmem %s3, %s303
        %p305 = pneg %p131
        %p306 = pneg %p128
        %s307 = smul.u32 2, %s25
        %p308 = scmp.lt.s32.totalorder %s307, 1
        %s309 = scalar_select %p308, %s307, 1
        %s310 = smul.addr %s309, 8
        %s311 = scalar_lea.vmem %s4, %s310
        %p312 = pneg %p157
        %p313 = pneg %p154
        %p314 = pneg %p178
        %p315 = pneg %p175
        %p316 = pneg %p206
        %p317 = pneg %p203
        %s318 = sand.u32 %s193, 1
        %s319 = scalar_lea.sflag [#allocation3], %s318
        %s320 = sand.u32 %s193, 1
        %s321 = smul.addr %s320, 16
        %s322 = scalar_lea.vmem [#allocation2], %s321
        %p323 = scmp.lt.s32.totalorder %s24, 1
        %s324 = scalar_select %p323, %s24, 1
        %s325 = smul.addr %s324, 4
        %s326 = smul.addr %s325, 8
        %s327 = scalar_lea.vmem %s0, %s326
        %s328 = smul.u32 2, %s25
        %p329 = scmp.lt.s32.totalorder %s328, 1
        %s330 = scalar_select %p329, %s328, 1
        %s331 = smul.addr %s330, 8
        %s332 = scalar_lea.vmem %s1, %s331
        %s333 = smul.u32 2, %s25
        %s334 = smul.u32 2, %s25
        %p335 = scmp.lt.s32.totalorder %s334, 1
        %s336 = scalar_select %p335, %s334, 1
        %s337 = smul.addr %s336, 8
        %s338 = scalar_lea.vmem %s2, %s337
        %s339 = smul.u32 2, %s25
        %s340 = smul.u32 2, %s25
        %p341 = scmp.lt.s32.totalorder %s340, 1
        %s342 = scalar_select %p341, %s340, 1
        %s343 = smul.addr %s342, 8
        %s344 = scalar_lea.vmem %s3, %s343
        %s345 = smul.u32 2, %s25
        %s346 = smul.u32 2, %s25
        %p347 = scmp.lt.s32.totalorder %s346, 1
        %s348 = scalar_select %p347, %s346, 1
        %s349 = smul.addr %s348, 8
        %s350 = scalar_lea.vmem %s4, %s349
        %s351 = smul.u32 2, %s25
        %s352 = smul.u32 2, %s25
        %v353 = vld [vmem:[%s327] sm:$0xff]
        %v354 = vld [vmem:[%s332] sm:$0xff]
        %v355 = vld [vmem:[%s332 + $0x8] sm:$0xff]
        %v356 = vld [vmem:[%s327 + $0x10] sm:$0xff]
        %s357 = scalar_lea.vmem %s332, 16
        %v358 = vld [vmem:[%s357] sm:$0xff]
        %v359 = vld [vmem:[%s357 + $0x8] sm:$0xff]
        %vm360 = vcmask 64512
        %v362 = vsel %vm360, %v358, 0
        %v365 = vsel %vm360, %v359, 0
        %367 = vmatprep.subr.mxu0 0.0
        %368 = vmatpush1.msra.mxu0 0.0
        %369 = vmatprep.subr.mxu0 0.0
        %370 = vmatpush1.msra.mxu0 0.0
        %371 = vmatprep.subr.mxu0 0.0
        %372 = vmatpush1.msra.mxu0 0.0
        %373 = vmatprep.subr.mxu0 0.0
        %374 = vmatpush1.msra.mxu0 0.0
        %375 = vmatprep.subr.mxu0 0.0
        %376 = vmatpush1.msra.mxu0 0.0
        %377 = vmatprep.subr.mxu0 0.0
        %378 = vmatpush1.msra.mxu0 0.0
        %379 = vmatprep.subr.mxu0 0.0
        %380 = vmatpush1.msra.mxu0 0.0
        %381 = vmatprep.subr.mxu0 0.0
        %382 = vmatpush1.msra.mxu0 0.0
        %383 = vmatprep.subr.mxu0 0.0
        %384 = vmatpush1.msra.mxu0 0.0
        %385 = vmatprep.subr.mxu0 0.0
        %386 = vmatpush1.msra.mxu0 0.0
        %387 = vmatprep.subr.mxu0 0.0
        %388 = vmatpush1.msra.mxu0 0.0
        %389 = vmatprep.subr.mxu0 0.0
        %390 = vmatpush1.msra.mxu0 0.0
        %391 = vmatprep.subr.mxu0 0.0
        %392 = vmatpush1.msra.mxu0 0.0
        %393 = vmatprep.subr.mxu0 0.0
        %394 = vmatpush1.msra.mxu0 0.0
        %395 = vmatprep.subr.mxu0 0.0
        %396 = vmatpush1.msra.mxu0 0.0
        %397 = vmatprep.subr.mxu0 0.0
        %398 = vmatpush1.msra.mxu0 %v356
        %399 = vmatprep.subr.mxu0 0.0
        %400 = vmatpush2.msra.mxu0 0.0
        %401 = vmatprep.subr.mxu0 0.0
        %402 = vmatpush2.msra.mxu0 0.0
        %403 = vmatprep.subr.mxu0 0.0
        %404 = vmatpush2.msra.mxu0 0.0
        %405 = vmatprep.subr.mxu0 0.0
        %406 = vmatpush2.msra.mxu0 0.0
        %407 = vmatprep.subr.mxu0 0.0
        %408 = vmatpush2.msra.mxu0 0.0
        %409 = vmatprep.subr.mxu0 0.0
        %410 = vmatpush2.msra.mxu0 0.0
        %411 = vmatprep.subr.mxu0 0.0
        %412 = vmatpush2.msra.mxu0 0.0
        %413 = vmatprep.subr.mxu0 0.0
        %414 = vmatpush2.msra.mxu0 0.0
        %415 = vmatprep.subr.mxu0 0.0
        %416 = vmatpush2.msra.mxu0 0.0
        %417 = vmatprep.subr.mxu0 0.0
        %418 = vmatpush2.msra.mxu0 0.0
        %419 = vmatprep.subr.mxu0 0.0
        %420 = vmatpush2.msra.mxu0 0.0
        %421 = vmatprep.subr.mxu0 0.0
        %422 = vmatpush2.msra.mxu0 0.0
        %423 = vmatprep.subr.mxu0 0.0
        %424 = vmatpush2.msra.mxu0 0.0
        %425 = vmatprep.subr.mxu0 0.0
        %426 = vmatpush2.msra.mxu0 0.0
        %427 = vmatprep.subr.mxu0 0.0
        %428 = vmatpush2.msra.mxu0 0.0
        %429 = vmatprep.subr.mxu0 0.0
        %430 = vmatpush2.msra.mxu0 0.0
        %431 = vmatprep.mubr.f32.mxu0 0.0
        %432 = vmatmul.mubr.f32.gmra.mxu0 %v362
        %v433 = vpop.f32.mrf.mxu0
        %v434 = vadd.f32 0.0, %v433
        %v435 = vpop.f32.mrf.mxu0
        %436 = vmatprep.mubr.f32.mxu0 0.0
        %437 = vmatmul.mubr.f32.gmra.mxu0 %v365
        %v438 = vpop.f32.mrf.mxu0
        %v439 = vadd.f32 0.0, %v438
        %v440 = vpop.f32.mrf.mxu0
        %441 = vdwg.mxu0
        %v443 = vsel %vm360, %v354, 0
        %v446 = vsel %vm360, %v355, 0
        %448 = vmatprep.subr.mxu0 0.0
        %449 = vmatpush1.msra.mxu0 0.0
        %450 = vmatprep.subr.mxu0 0.0
        %451 = vmatpush1.msra.mxu0 0.0
        %452 = vmatprep.subr.mxu0 0.0
        %453 = vmatpush1.msra.mxu0 0.0
        %454 = vmatprep.subr.mxu0 0.0
        %455 = vmatpush1.msra.mxu0 0.0
        %456 = vmatprep.subr.mxu0 0.0
        %457 = vmatpush1.msra.mxu0 0.0
        %458 = vmatprep.subr.mxu0 0.0
        %459 = vmatpush1.msra.mxu0 0.0
        %460 = vmatprep.subr.mxu0 0.0
        %461 = vmatpush1.msra.mxu0 0.0
        %462 = vmatprep.subr.mxu0 0.0
        %463 = vmatpush1.msra.mxu0 0.0
        %464 = vmatprep.subr.mxu0 0.0
        %465 = vmatpush1.msra.mxu0 0.0
        %466 = vmatprep.subr.mxu0 0.0
        %467 = vmatpush1.msra.mxu0 0.0
        %468 = vmatprep.subr.mxu0 0.0
        %469 = vmatpush1.msra.mxu0 0.0
        %470 = vmatprep.subr.mxu0 0.0
        %471 = vmatpush1.msra.mxu0 0.0
        %472 = vmatprep.subr.mxu0 0.0
        %473 = vmatpush1.msra.mxu0 0.0
        %474 = vmatprep.subr.mxu0 0.0
        %475 = vmatpush1.msra.mxu0 0.0
        %476 = vmatprep.subr.mxu0 0.0
        %477 = vmatpush1.msra.mxu0 0.0
        %478 = vmatprep.subr.mxu0 0.0
        %479 = vmatpush1.msra.mxu0 %v353
        %480 = vmatprep.subr.mxu0 0.0
        %481 = vmatpush2.msra.mxu0 0.0
        %482 = vmatprep.subr.mxu0 0.0
        %483 = vmatpush2.msra.mxu0 0.0
        %484 = vmatprep.subr.mxu0 0.0
        %485 = vmatpush2.msra.mxu0 0.0
        %486 = vmatprep.subr.mxu0 0.0
        %487 = vmatpush2.msra.mxu0 0.0
        %488 = vmatprep.subr.mxu0 0.0
        %489 = vmatpush2.msra.mxu0 0.0
        %490 = vmatprep.subr.mxu0 0.0
        %491 = vmatpush2.msra.mxu0 0.0
        %492 = vmatprep.subr.mxu0 0.0
        %493 = vmatpush2.msra.mxu0 0.0
        %494 = vmatprep.subr.mxu0 0.0
        %495 = vmatpush2.msra.mxu0 0.0
        %496 = vmatprep.subr.mxu0 0.0
        %497 = vmatpush2.msra.mxu0 0.0
        %498 = vmatprep.subr.mxu0 0.0
        %499 = vmatpush2.msra.mxu0 0.0
        %500 = vmatprep.subr.mxu0 0.0
        %501 = vmatpush2.msra.mxu0 0.0
        %502 = vmatprep.subr.mxu0 0.0
        %503 = vmatpush2.msra.mxu0 0.0
        %504 = vmatprep.subr.mxu0 0.0
        %505 = vmatpush2.msra.mxu0 0.0
        %506 = vmatprep.subr.mxu0 0.0
        %507 = vmatpush2.msra.mxu0 0.0
        %508 = vmatprep.subr.mxu0 0.0
        %509 = vmatpush2.msra.mxu0 0.0
        %510 = vmatprep.subr.mxu0 0.0
        %511 = vmatpush2.msra.mxu0 0.0
        %512 = vmatprep.mubr.f32.mxu0 0.0
        %513 = vmatmul.mubr.f32.gmra.mxu0 %v443
        %v514 = vpop.f32.mrf.mxu0
        %v515 = vadd.f32 %v434, %v514
        %v516 = vpop.f32.mrf.mxu0
        %517 = vmatprep.mubr.f32.mxu0 0.0
        %518 = vmatmul.mubr.f32.gmra.mxu0 %v446
        %v519 = vpop.f32.mrf.mxu0
        %v520 = vadd.f32 %v439, %v519
        %v521 = vpop.f32.mrf.mxu0
        %522 = vdwg.mxu0
        %v523 = vld [vmem:[%s327] sm:$0xff]
        %v524 = vld [vmem:[%s327 + $0x8] sm:$0xff]
        %s525 = scalar_lea.vmem %s332, 32
        %v526 = vld [vmem:[%s525] sm:$0xff]
        %v527 = vld [vmem:[%s525 + $0x8] sm:$0xff]
        %530 = vrot.lane.b32.xlu0 %v523, 127
        %v531 = vpop.permute.xlu0 %530
        %532 = vrot.lane.b32.xlu0 %v524, 127
        %v533 = vpop.permute.xlu0 %532
        %vm534 = vcmask 1039360
        %v535 = vsel %vm534, %v531, %v533
        %v538 = vsel %vm360, %v526, 0
        %v541 = vsel %vm360, %v527, 0
        %543 = vmatprep.subr.mxu0 0.0
        %544 = vmatpush1.msra.mxu0 0.0
        %545 = vmatprep.subr.mxu0 0.0
        %546 = vmatpush1.msra.mxu0 0.0
        %547 = vmatprep.subr.mxu0 0.0
        %548 = vmatpush1.msra.mxu0 0.0
        %549 = vmatprep.subr.mxu0 0.0
        %550 = vmatpush1.msra.mxu0 0.0
        %551 = vmatprep.subr.mxu0 0.0
        %552 = vmatpush1.msra.mxu0 0.0
        %553 = vmatprep.subr.mxu0 0.0
        %554 = vmatpush1.msra.mxu0 0.0
        %555 = vmatprep.subr.mxu0 0.0
        %556 = vmatpush1.msra.mxu0 0.0
        %557 = vmatprep.subr.mxu0 0.0
        %558 = vmatpush1.msra.mxu0 0.0
        %559 = vmatprep.subr.mxu0 0.0
        %560 = vmatpush1.msra.mxu0 0.0
        %561 = vmatprep.subr.mxu0 0.0
        %562 = vmatpush1.msra.mxu0 0.0
        %563 = vmatprep.subr.mxu0 0.0
        %564 = vmatpush1.msra.mxu0 0.0
        %565 = vmatprep.subr.mxu0 0.0
        %566 = vmatpush1.msra.mxu0 0.0
        %567 = vmatprep.subr.mxu0 0.0
        %568 = vmatpush1.msra.mxu0 0.0
        %569 = vmatprep.subr.mxu0 0.0
        %570 = vmatpush1.msra.mxu0 0.0
        %571 = vmatprep.subr.mxu0 0.0
        %572 = vmatpush1.msra.mxu0 0.0
        %573 = vmatprep.subr.mxu0 0.0
        %574 = vmatpush1.msra.mxu0 %v535
        %575 = vmatprep.subr.mxu0 0.0
        %576 = vmatpush2.msra.mxu0 0.0
        %577 = vmatprep.subr.mxu0 0.0
        %578 = vmatpush2.msra.mxu0 0.0
        %579 = vmatprep.subr.mxu0 0.0
        %580 = vmatpush2.msra.mxu0 0.0
        %581 = vmatprep.subr.mxu0 0.0
        %582 = vmatpush2.msra.mxu0 0.0
        %583 = vmatprep.subr.mxu0 0.0
        %584 = vmatpush2.msra.mxu0 0.0
        %585 = vmatprep.subr.mxu0 0.0
        %586 = vmatpush2.msra.mxu0 0.0
        %587 = vmatprep.subr.mxu0 0.0
        %588 = vmatpush2.msra.mxu0 0.0
        %589 = vmatprep.subr.mxu0 0.0
        %590 = vmatpush2.msra.mxu0 0.0
        %591 = vmatprep.subr.mxu0 0.0
        %592 = vmatpush2.msra.mxu0 0.0
        %593 = vmatprep.subr.mxu0 0.0
        %594 = vmatpush2.msra.mxu0 0.0
        %595 = vmatprep.subr.mxu0 0.0
        %596 = vmatpush2.msra.mxu0 0.0
        %597 = vmatprep.subr.mxu0 0.0
        %598 = vmatpush2.msra.mxu0 0.0
        %599 = vmatprep.subr.mxu0 0.0
        %600 = vmatpush2.msra.mxu0 0.0
        %601 = vmatprep.subr.mxu0 0.0
        %602 = vmatpush2.msra.mxu0 0.0
        %603 = vmatprep.subr.mxu0 0.0
        %604 = vmatpush2.msra.mxu0 0.0
        %605 = vmatprep.subr.mxu0 0.0
        %606 = vmatpush2.msra.mxu0 0.0
        %607 = vmatprep.mubr.f32.mxu0 0.0
        %608 = vmatmul.mubr.f32.gmra.mxu0 %v538
        %v609 = vpop.f32.mrf.mxu0
        %v610 = vadd.f32 0.0, %v609
        %v611 = vpop.f32.mrf.mxu0
        %612 = vmatprep.mubr.f32.mxu0 0.0
        %613 = vmatmul.mubr.f32.gmra.mxu0 %v541
        %v614 = vpop.f32.mrf.mxu0
        %v615 = vadd.f32 0.0, %v614
        %v616 = vpop.f32.mrf.mxu0
        %617 = vdwg.mxu0
        %v618 = vadd.f32 %v515, %v610
        %v619 = vadd.f32 %v520, %v615
        %v620 = vld [vmem:[%s327 + $0x10] sm:$0xff]
        %v621 = vld [vmem:[%s327 + $0x18] sm:$0xff]
        %s622 = scalar_lea.vmem %s332, 48
        %v623 = vld [vmem:[%s622] sm:$0xff]
        %v624 = vld [vmem:[%s622 + $0x8] sm:$0xff]
        %627 = vrot.lane.b32.xlu0 %v620, 127
        %v628 = vpop.permute.xlu0 %627
        %629 = vrot.lane.b32.xlu0 %v621, 127
        %v630 = vpop.permute.xlu0 %629
        %v631 = vsel %vm534, %v628, %v630
        %v634 = vsel %vm360, %v623, 0
        %v637 = vsel %vm360, %v624, 0
        %639 = vmatprep.subr.mxu0 0.0
        %640 = vmatpush1.msra.mxu0 0.0
        %641 = vmatprep.subr.mxu0 0.0
        %642 = vmatpush1.msra.mxu0 0.0
        %643 = vmatprep.subr.mxu0 0.0
        %644 = vmatpush1.msra.mxu0 0.0
        %645 = vmatprep.subr.mxu0 0.0
        %646 = vmatpush1.msra.mxu0 0.0
        %647 = vmatprep.subr.mxu0 0.0
        %648 = vmatpush1.msra.mxu0 0.0
        %649 = vmatprep.subr.mxu0 0.0
        %650 = vmatpush1.msra.mxu0 0.0
        %651 = vmatprep.subr.mxu0 0.0
        %652 = vmatpush1.msra.mxu0 0.0
        %653 = vmatprep.subr.mxu0 0.0
        %654 = vmatpush1.msra.mxu0 0.0
        %655 = vmatprep.subr.mxu0 0.0
        %656 = vmatpush1.msra.mxu0 0.0
        %657 = vmatprep.subr.mxu0 0.0
        %658 = vmatpush1.msra.mxu0 0.0
        %659 = vmatprep.subr.mxu0 0.0
        %660 = vmatpush1.msra.mxu0 0.0
        %661 = vmatprep.subr.mxu0 0.0
        %662 = vmatpush1.msra.mxu0 0.0
        %663 = vmatprep.subr.mxu0 0.0
        %664 = vmatpush1.msra.mxu0 0.0
        %665 = vmatprep.subr.mxu0 0.0
        %666 = vmatpush1.msra.mxu0 0.0
        %667 = vmatprep.subr.mxu0 0.0
        %668 = vmatpush1.msra.mxu0 0.0
        %669 = vmatprep.subr.mxu0 0.0
        %670 = vmatpush1.msra.mxu0 %v631
        %671 = vmatprep.subr.mxu0 0.0
        %672 = vmatpush2.msra.mxu0 0.0
        %673 = vmatprep.subr.mxu0 0.0
        %674 = vmatpush2.msra.mxu0 0.0
        %675 = vmatprep.subr.mxu0 0.0
        %676 = vmatpush2.msra.mxu0 0.0
        %677 = vmatprep.subr.mxu0 0.0
        %678 = vmatpush2.msra.mxu0 0.0
        %679 = vmatprep.subr.mxu0 0.0
        %680 = vmatpush2.msra.mxu0 0.0
        %681 = vmatprep.subr.mxu0 0.0
        %682 = vmatpush2.msra.mxu0 0.0
        %683 = vmatprep.subr.mxu0 0.0
        %684 = vmatpush2.msra.mxu0 0.0
        %685 = vmatprep.subr.mxu0 0.0
        %686 = vmatpush2.msra.mxu0 0.0
        %687 = vmatprep.subr.mxu0 0.0
        %688 = vmatpush2.msra.mxu0 0.0
        %689 = vmatprep.subr.mxu0 0.0
        %690 = vmatpush2.msra.mxu0 0.0
        %691 = vmatprep.subr.mxu0 0.0
        %692 = vmatpush2.msra.mxu0 0.0
        %693 = vmatprep.subr.mxu0 0.0
        %694 = vmatpush2.msra.mxu0 0.0
        %695 = vmatprep.subr.mxu0 0.0
        %696 = vmatpush2.msra.mxu0 0.0
        %697 = vmatprep.subr.mxu0 0.0
        %698 = vmatpush2.msra.mxu0 0.0
        %699 = vmatprep.subr.mxu0 0.0
        %700 = vmatpush2.msra.mxu0 0.0
        %701 = vmatprep.subr.mxu0 0.0
        %702 = vmatpush2.msra.mxu0 0.0
        %703 = vmatprep.mubr.f32.mxu0 0.0
        %704 = vmatmul.mubr.f32.gmra.mxu0 %v634
        %v705 = vpop.f32.mrf.mxu0
        %v706 = vadd.f32 0.0, %v705
        %v707 = vpop.f32.mrf.mxu0
        %708 = vmatprep.mubr.f32.mxu0 0.0
        %709 = vmatmul.mubr.f32.gmra.mxu0 %v637
        %v710 = vpop.f32.mrf.mxu0
        %v711 = vadd.f32 0.0, %v710
        %v712 = vpop.f32.mrf.mxu0
        %713 = vdwg.mxu0
        %v714 = vadd.f32 %v618, %v706
        %v715 = vadd.f32 %v619, %v711
        %s716 = scalar_lea.vmem %s332, 64
        %v717 = vld [vmem:[%s716] sm:$0xff]
        %v718 = vld [vmem:[%s716 + $0x8] sm:$0xff]
        %719 = vrot.lane.b32.xlu0 %v523, 126
        %v720 = vpop.permute.xlu0 %719
        %721 = vrot.lane.b32.xlu0 %v524, 126
        %v722 = vpop.permute.xlu0 %721
        %vm723 = vcmask 1031168
        %v724 = vsel %vm723, %v720, %v722
        %v727 = vsel %vm360, %v717, 0
        %v730 = vsel %vm360, %v718, 0
        %732 = vmatprep.subr.mxu0 0.0
        %733 = vmatpush1.msra.mxu0 0.0
        %734 = vmatprep.subr.mxu0 0.0
        %735 = vmatpush1.msra.mxu0 0.0
        %736 = vmatprep.subr.mxu0 0.0
        %737 = vmatpush1.msra.mxu0 0.0
        %738 = vmatprep.subr.mxu0 0.0
        %739 = vmatpush1.msra.mxu0 0.0
        %740 = vmatprep.subr.mxu0 0.0
        %741 = vmatpush1.msra.mxu0 0.0
        %742 = vmatprep.subr.mxu0 0.0
        %743 = vmatpush1.msra.mxu0 0.0
        %744 = vmatprep.subr.mxu0 0.0
        %745 = vmatpush1.msra.mxu0 0.0
        %746 = vmatprep.subr.mxu0 0.0
        %747 = vmatpush1.msra.mxu0 0.0
        %748 = vmatprep.subr.mxu0 0.0
        %749 = vmatpush1.msra.mxu0 0.0
        %750 = vmatprep.subr.mxu0 0.0
        %751 = vmatpush1.msra.mxu0 0.0
        %752 = vmatprep.subr.mxu0 0.0
        %753 = vmatpush1.msra.mxu0 0.0
        %754 = vmatprep.subr.mxu0 0.0
        %755 = vmatpush1.msra.mxu0 0.0
        %756 = vmatprep.subr.mxu0 0.0
        %757 = vmatpush1.msra.mxu0 0.0
        %758 = vmatprep.subr.mxu0 0.0
        %759 = vmatpush1.msra.mxu0 0.0
        %760 = vmatprep.subr.mxu0 0.0
        %761 = vmatpush1.msra.mxu0 0.0
        %762 = vmatprep.subr.mxu0 0.0
        %763 = vmatpush1.msra.mxu0 %v724
        %764 = vmatprep.subr.mxu0 0.0
        %765 = vmatpush2.msra.mxu0 0.0
        %766 = vmatprep.subr.mxu0 0.0
        %767 = vmatpush2.msra.mxu0 0.0
        %768 = vmatprep.subr.mxu0 0.0
        %769 = vmatpush2.msra.mxu0 0.0
        %770 = vmatprep.subr.mxu0 0.0
        %771 = vmatpush2.msra.mxu0 0.0
        %772 = vmatprep.subr.mxu0 0.0
        %773 = vmatpush2.msra.mxu0 0.0
        %774 = vmatprep.subr.mxu0 0.0
        %775 = vmatpush2.msra.mxu0 0.0
        %776 = vmatprep.subr.mxu0 0.0
        %777 = vmatpush2.msra.mxu0 0.0
        %778 = vmatprep.subr.mxu0 0.0
        %779 = vmatpush2.msra.mxu0 0.0
        %780 = vmatprep.subr.mxu0 0.0
        %781 = vmatpush2.msra.mxu0 0.0
        %782 = vmatprep.subr.mxu0 0.0
        %783 = vmatpush2.msra.mxu0 0.0
        %784 = vmatprep.subr.mxu0 0.0
        %785 = vmatpush2.msra.mxu0 0.0
        %786 = vmatprep.subr.mxu0 0.0
        %787 = vmatpush2.msra.mxu0 0.0
        %788 = vmatprep.subr.mxu0 0.0
        %789 = vmatpush2.msra.mxu0 0.0
        %790 = vmatprep.subr.mxu0 0.0
        %791 = vmatpush2.msra.mxu0 0.0
        %792 = vmatprep.subr.mxu0 0.0
        %793 = vmatpush2.msra.mxu0 0.0
        %794 = vmatprep.subr.mxu0 0.0
        %795 = vmatpush2.msra.mxu0 0.0
        %796 = vmatprep.mubr.f32.mxu0 0.0
        %797 = vmatmul.mubr.f32.gmra.mxu0 %v727
        %v798 = vpop.f32.mrf.mxu0
        %v799 = vadd.f32 0.0, %v798
        %v800 = vpop.f32.mrf.mxu0
        %801 = vmatprep.mubr.f32.mxu0 0.0
        %802 = vmatmul.mubr.f32.gmra.mxu0 %v730
        %v803 = vpop.f32.mrf.mxu0
        %v804 = vadd.f32 0.0, %v803
        %v805 = vpop.f32.mrf.mxu0
        %806 = vdwg.mxu0
        %v807 = vadd.f32 %v714, %v799
        %v808 = vadd.f32 %v715, %v804
        %v809 = vld [vmem:[%s338] sm:$0xff]
        %v810 = vld [vmem:[%s338 + $0x8] sm:$0xff]
        %812 = vset.pattern.permute.xlu0 0
        %813 = vperm.xlu0 %812, %v809
        %v814 = vpop.permute.xlu0 %813
        %817 = vset.pattern.permute.xlu0 0
        %818 = vperm.xlu0 %817, %v810
        %v819 = vpop.permute.xlu0 %818
        %v821 = vadd.f32 %v807, %v814
        %v822 = vadd.f32 %v808, %v819
        %v823 = vlaneseq
        %v824 = vand.u32 %v823, 127
        %vm825 = vcmp.lt.s32.totalorder %v824, 9
        %v826 = vsel %vm825, 1, 0
        %vm827 = vcmp.eq.s32.totalorder %v826, 1
        %v828 = vsel %vm827, %v821, 0.0
        %v829 = vsel %vm827, %v822, 0.0
        %830 = vadd.xlane.f32.xlu0 %v828
        %v831 = vpop.xlane.xlu0 %830
        %832 = vadd.xlane.f32.xlu0 %v829
        %v833 = vpop.xlane.xlu0 %832
        %v834 = vmul.f32 %v828, %v828
        %v835 = vmul.f32 %v829, %v829
        %836 = vadd.xlane.f32.xlu0 %v834
        %v837 = vpop.xlane.xlu0 %836
        %838 = vadd.xlane.f32.xlu0 %v835
        %v839 = vpop.xlane.xlu0 %838
        %v840 = vld [vmem:[%s5] sm:$0xff]
        %v841 = vld [vmem:[%s5 + $0x8] sm:$0xff]
        %vm842 = vcmask 130048
        %v844 = vsel %vm842, %v840, 0
        %v847 = vsel %vm842, %v841, 0
        %849 = vmatprep.subr.mxu0 0.0
        %850 = vmatpush1.msra.mxu0 0.0
        %851 = vmatprep.subr.mxu0 0.0
        %852 = vmatpush1.msra.mxu0 0.0
        %853 = vmatprep.subr.mxu0 0.0
        %854 = vmatpush1.msra.mxu0 0.0
        %855 = vmatprep.subr.mxu0 0.0
        %856 = vmatpush1.msra.mxu0 0.0
        %857 = vmatprep.subr.mxu0 0.0
        %858 = vmatpush1.msra.mxu0 0.0
        %859 = vmatprep.subr.mxu0 0.0
        %860 = vmatpush1.msra.mxu0 0.0
        %861 = vmatprep.subr.mxu0 0.0
        %862 = vmatpush1.msra.mxu0 0.0
        %863 = vmatprep.subr.mxu0 0.0
        %864 = vmatpush1.msra.mxu0 0.0
        %865 = vmatprep.subr.mxu0 0.0
        %866 = vmatpush1.msra.mxu0 0.0
        %867 = vmatprep.subr.mxu0 0.0
        %868 = vmatpush1.msra.mxu0 0.0
        %869 = vmatprep.subr.mxu0 0.0
        %870 = vmatpush1.msra.mxu0 0.0
        %871 = vmatprep.subr.mxu0 0.0
        %872 = vmatpush1.msra.mxu0 0.0
        %873 = vmatprep.subr.mxu0 0.0
        %874 = vmatpush1.msra.mxu0 0.0
        %875 = vmatprep.subr.mxu0 0.0
        %876 = vmatpush1.msra.mxu0 0.0
        %877 = vmatprep.subr.mxu0 0.0
        %878 = vmatpush1.msra.mxu0 %v833
        %879 = vmatprep.subr.mxu0 0.0
        %880 = vmatpush1.msra.mxu0 %v831
        %881 = vmatprep.subr.mxu0 0.0
        %882 = vmatpush2.msra.mxu0 0.0
        %883 = vmatprep.subr.mxu0 0.0
        %884 = vmatpush2.msra.mxu0 0.0
        %885 = vmatprep.subr.mxu0 0.0
        %886 = vmatpush2.msra.mxu0 0.0
        %887 = vmatprep.subr.mxu0 0.0
        %888 = vmatpush2.msra.mxu0 0.0
        %889 = vmatprep.subr.mxu0 0.0
        %890 = vmatpush2.msra.mxu0 0.0
        %891 = vmatprep.subr.mxu0 0.0
        %892 = vmatpush2.msra.mxu0 0.0
        %893 = vmatprep.subr.mxu0 0.0
        %894 = vmatpush2.msra.mxu0 0.0
        %895 = vmatprep.subr.mxu0 0.0
        %896 = vmatpush2.msra.mxu0 0.0
        %897 = vmatprep.subr.mxu0 0.0
        %898 = vmatpush2.msra.mxu0 0.0
        %899 = vmatprep.subr.mxu0 0.0
        %900 = vmatpush2.msra.mxu0 0.0
        %901 = vmatprep.subr.mxu0 0.0
        %902 = vmatpush2.msra.mxu0 0.0
        %903 = vmatprep.subr.mxu0 0.0
        %904 = vmatpush2.msra.mxu0 0.0
        %905 = vmatprep.subr.mxu0 0.0
        %906 = vmatpush2.msra.mxu0 0.0
        %907 = vmatprep.subr.mxu0 0.0
        %908 = vmatpush2.msra.mxu0 0.0
        %909 = vmatprep.subr.mxu0 0.0
        %910 = vmatpush2.msra.mxu0 0.0
        %911 = vmatprep.subr.mxu0 0.0
        %912 = vmatpush2.msra.mxu0 0.0
        %913 = vmatprep.mubr.f32.mxu0 0.0
        %914 = vmatmul.mubr.f32.gmra.mxu0 %v844
        %v915 = vpop.f32.mrf.mxu0
        %v916 = vadd.f32 0.0, %v915
        %v917 = vpop.f32.mrf.mxu0
        %918 = vmatprep.mubr.f32.mxu0 0.0
        %919 = vmatmul.mubr.f32.gmra.mxu0 %v847
        %v920 = vpop.f32.mrf.mxu0
        %v921 = vadd.f32 0.0, %v920
        %v922 = vpop.f32.mrf.mxu0
        %923 = vdwg.mxu0
        %924 = vmatprep.subr.mxu0 0.0
        %925 = vmatpush1.msra.mxu0 0.0
        %926 = vmatprep.subr.mxu0 0.0
        %927 = vmatpush1.msra.mxu0 0.0
        %928 = vmatprep.subr.mxu0 0.0
        %929 = vmatpush1.msra.mxu0 0.0
        %930 = vmatprep.subr.mxu0 0.0
        %931 = vmatpush1.msra.mxu0 0.0
        %932 = vmatprep.subr.mxu0 0.0
        %933 = vmatpush1.msra.mxu0 0.0
        %934 = vmatprep.subr.mxu0 0.0
        %935 = vmatpush1.msra.mxu0 0.0
        %936 = vmatprep.subr.mxu0 0.0
        %937 = vmatpush1.msra.mxu0 0.0
        %938 = vmatprep.subr.mxu0 0.0
        %939 = vmatpush1.msra.mxu0 0.0
        %940 = vmatprep.subr.mxu0 0.0
        %941 = vmatpush1.msra.mxu0 0.0
        %942 = vmatprep.subr.mxu0 0.0
        %943 = vmatpush1.msra.mxu0 0.0
        %944 = vmatprep.subr.mxu0 0.0
        %945 = vmatpush1.msra.mxu0 0.0
        %946 = vmatprep.subr.mxu0 0.0
        %947 = vmatpush1.msra.mxu0 0.0
        %948 = vmatprep.subr.mxu0 0.0
        %949 = vmatpush1.msra.mxu0 0.0
        %950 = vmatprep.subr.mxu0 0.0
        %951 = vmatpush1.msra.mxu0 0.0
        %952 = vmatprep.subr.mxu0 0.0
        %953 = vmatpush1.msra.mxu0 %v839
        %954 = vmatprep.subr.mxu0 0.0
        %955 = vmatpush1.msra.mxu0 %v837
        %956 = vmatprep.subr.mxu0 0.0
        %957 = vmatpush2.msra.mxu0 0.0
        %958 = vmatprep.subr.mxu0 0.0
        %959 = vmatpush2.msra.mxu0 0.0
        %960 = vmatprep.subr.mxu0 0.0
        %961 = vmatpush2.msra.mxu0 0.0
        %962 = vmatprep.subr.mxu0 0.0
        %963 = vmatpush2.msra.mxu0 0.0
        %964 = vmatprep.subr.mxu0 0.0
        %965 = vmatpush2.msra.mxu0 0.0
        %966 = vmatprep.subr.mxu0 0.0
        %967 = vmatpush2.msra.mxu0 0.0
        %968 = vmatprep.subr.mxu0 0.0
        %969 = vmatpush2.msra.mxu0 0.0
        %970 = vmatprep.subr.mxu0 0.0
        %971 = vmatpush2.msra.mxu0 0.0
        %972 = vmatprep.subr.mxu0 0.0
        %973 = vmatpush2.msra.mxu0 0.0
        %974 = vmatprep.subr.mxu0 0.0
        %975 = vmatpush2.msra.mxu0 0.0
        %976 = vmatprep.subr.mxu0 0.0
        %977 = vmatpush2.msra.mxu0 0.0
        %978 = vmatprep.subr.mxu0 0.0
        %979 = vmatpush2.msra.mxu0 0.0
        %980 = vmatprep.subr.mxu0 0.0
        %981 = vmatpush2.msra.mxu0 0.0
        %982 = vmatprep.subr.mxu0 0.0
        %983 = vmatpush2.msra.mxu0 0.0
        %984 = vmatprep.subr.mxu0 0.0
        %985 = vmatpush2.msra.mxu0 0.0
        %986 = vmatprep.subr.mxu0 0.0
        %987 = vmatpush2.msra.mxu0 0.0
        %988 = vmatprep.mubr.f32.mxu0 0.0
        %989 = vmatmul.mubr.f32.gmra.mxu0 %v844
        %v990 = vpop.f32.mrf.mxu0
        %v991 = vadd.f32 0.0, %v990
        %v992 = vpop.f32.mrf.mxu0
        %993 = vmatprep.mubr.f32.mxu0 0.0
        %994 = vmatmul.mubr.f32.gmra.mxu0 %v847
        %v995 = vpop.f32.mrf.mxu0
        %v996 = vadd.f32 0.0, %v995
        %v997 = vpop.f32.mrf.mxu0
        %998 = vdwg.mxu0
        %v999 = vmul.f32 %v916, 0.013888889
        %v1000 = vmul.f32 %v921, 0.013888889
        %v1001 = vmul.f32 %v991, 0.013888889
        %v1002 = vmul.f32 %v996, 0.013888889
        %v1003 = vmul.f32 %v999, %v999
        %v1004 = vmul.f32 %v1000, %v1000
        %v1005 = vsub.f32 %v1001, %v1003
        %v1006 = vsub.f32 %v1002, %v1004
        %v1007 = vmax.f32 %v1005, 0.0
        %v1008 = vmax.f32 %v1006, 0.0
        %v1009 = vadd.f32 %v1007, 1e-05
        %v1010 = vadd.f32 %v1008, 1e-05
        %v1011 = vrsqrt.pop %v1009
        %v1012 = vrsqrt.pop %v1010
        %v1013 = vld [vmem:[%s344] sm:$0xff]
        %v1014 = vld [vmem:[%s344 + $0x8] sm:$0xff]
        %v1015 = vmul.f32 %v1013, %v1011
        %v1016 = vmul.f32 %v1014, %v1012
        %v1017 = vld [vmem:[%s350] sm:$0xff]
        %v1018 = vld [vmem:[%s350 + $0x8] sm:$0xff]
        %v1019 = vmul.f32 %v999, %v1015
        %v1020 = vmul.f32 %v1000, %v1016
        %v1021 = vsub.f32 %v1017, %v1019
        %v1022 = vsub.f32 %v1018, %v1020
        %1024 = vset.pattern.permute.xlu0 0
        %1025 = vperm.xlu0 %1024, %v1015
        %v1026 = vpop.permute.xlu0 %1025
        %1029 = vset.pattern.permute.xlu0 0
        %1030 = vperm.xlu0 %1029, %v1016
        %v1031 = vpop.permute.xlu0 %1030
        %v1033 = vmul.f32 %v821, %v1026
        %v1034 = vmul.f32 %v822, %v1031
        %1036 = vset.pattern.permute.xlu0 0
        %1037 = vperm.xlu0 %1036, %v1021
        %v1038 = vpop.permute.xlu0 %1037
        %1041 = vset.pattern.permute.xlu0 0
        %1042 = vperm.xlu0 %1041, %v1022
        %v1043 = vpop.permute.xlu0 %1042
        %v1045 = vadd.f32 %v1033, %v1038
        %v1046 = vadd.f32 %v1034, %v1043
        %v1047 = vmax.f32 %v1045, 0.0
        %v1048 = vmax.f32 %v1046, 0.0
        %1049 = vst [vmem:[%s322] sm:$0xff] %v1047
        %1050 = vst [vmem:[%s322 + $0x8] sm:$0xff] %v1048
        %s1051 = sand.u32 %s193, 1
        %s1052 = scalar_lea.sflag [#allocation3], %s1051
        %s1053 = sand.u32 %s193, 1
        %s1054 = smul.addr %s1053, 16
        %s1055 = scalar_lea.vmem [#allocation2], %s1054
        // Predicated region
        $region45: #{tpu_custom_call.1} parent=43 // pred_check
          %p1056 = pneg %p203
        $region46: #{tpu_custom_call.1} parent=43 // pred_check_branch
          %1058 = sbr.rel (%p1056) target = $region48
        $region47: #{tpu_custom_call.1} parent=43 // pred_region
          %s1059 = smul.u32 2, %s25
          %s1061 = ssub.s32 256, 256
          %1062 = vsyncadd %s1052, %s1061
          %s1063 = smul.addr %s24, 2
          %s1064 = sadd.s32 %s1059, %s1063
          %s1065 = smul.addr %s1064, 128
          %s1066 = scalar_lea.hbm %s6, %s1065
          %s1067 = sshll.u32 %s1055, 4
          %s1068 = int_to_ptr.vmem [resolvable:$true] %s1067
          %1073 = dma.vmem_to_hbm [thread:$0]  %s1068, 256, %s1066, %s1052, 128, 128, 8
        $region48: #{tpu_custom_call.1} parent=43 // pred_fallthru
          _
      $region44: #{tpu_custom_call.1} parent=5 // pred_fallthru
        _
      %p1074 = scmp.le.s32.totalorder 2, %s15
      // Predicated region
      $region49: #{tpu_custom_call.1} parent=5 // pred_check
        %p1075 = pneg %p1074
      $region50: #{tpu_custom_call.1} parent=5 // pred_check_branch
        %1077 = sbr.rel (%p1075) target = $region52
      $region51: #{tpu_custom_call.1} parent=5 // pred_region
        %s1078 = ssub.s32 %s15, 2
        // Predicated region
        $region53: #{tpu_custom_call.1} parent=51 // pred_check
          %p1079 = pneg %p209
        $region54: #{tpu_custom_call.1} parent=51 // pred_check_branch
          %1081 = sbr.rel (%p1079) target = $region56
        $region55: #{tpu_custom_call.1} parent=51 // pred_region
          %s1082 = sand.u32 %s194, 1
          %s1083 = scalar_lea.sflag [#allocation3], %s1082
          %s1084 = sand.u32 %s194, 1
          %s1085 = smul.addr %s1084, 16
          %s1086 = scalar_lea.vmem [#allocation2], %s1085
          %1087 = dma.done %s1083, 256
        $region56: #{tpu_custom_call.1} parent=51 // pred_fallthru
          _
      $region52: #{tpu_custom_call.1} parent=5 // pred_fallthru
        _
    $region6: #{tpu_custom_call.1} parent=1 // loop_footer
      %s19 = sadd.s32 1, %s15
    $region7: #{tpu_custom_call.1} parent=1 // loop_footer_branch
      %14 = sbr.rel target = $region3
    $region8: #{tpu_custom_call.1} parent=1 // loop_exit
      _
    %1088 = vsyncpa [#allocation3], 1
    %s1089 = scalar_lea.sflag [#allocation3], 1
    %1090 = vsyncpa %s1089, 1

</llo_original>
